<compile_context>
chip_gen: v5e
topology: v5e:2x2
jax: 0.10.0
libtpu: 0.0.40
codegen_flags: <defaults>
</compile_context>

<pallas_src>
import math
import numpy as np
import jax
import jax.numpy as jnp
from jax.experimental import pallas as pl
from jax.experimental.pallas import tpu as pltpu

BN_EPS = 1e-5
BN_SCALE = 1.0 / math.sqrt(1.0 + BN_EPS)   # eval-mode BatchNorm1d scale


# ----------------------------------------------------------------------------
# Pallas kernel: one example per grid step, everything 128-lane dense.
# ----------------------------------------------------------------------------
def gnn_block_kernel(x_ref, k1_ref, k2_ref, ksp_ref, wth_ref, wtx_ref,
                     mlpb_ref, watt_ref, o_ref):
    NF = x_ref.shape[-1]                                       # 128
    x = x_ref[0]                                               # (1, NF) f32
    xb = x.astype(jnp.bfloat16)

    # ---- ScatteringLayer 1: single (1,NF)@(NF,3NF) bf16 matmul, f32 acc ------
    y1 = jnp.tanh(jnp.dot(xb, k1_ref[...],
                          preferred_element_type=jnp.float32))        # (1, 3NF)
    # re-block the 3 lane-tiles into 3 rows (128-lane-tile-aligned slices only)
    y1r = jnp.concatenate([y1[:, c * NF:(c + 1) * NF] for c in range(3)],
                          axis=0).astype(jnp.bfloat16)                # (3, NF)

    # ---- ScatteringLayer 2: single (3,NF)@(NF,3NF) matmul --------------------
    y2 = jnp.tanh(jnp.dot(y1r, k2_ref[...],
                          preferred_element_type=jnp.float32))        # (3, 3NF)
    # 9 channels, row 3*m + c (downstream math is channel-order invariant)
    ch = jnp.concatenate([y2[:, m * NF:(m + 1) * NF] for m in range(3)],
                         axis=0)                                      # (9, NF) f32

    # ---- SpectralAttention ---------------------------------------------------
    mean = jnp.sum(ch, axis=0, keepdims=True) * (1.0 / 9.0)           # (1, NF)
    hsp = jnp.maximum(jnp.dot(mean.astype(jnp.bfloat16), ksp_ref[...],
                              preferred_element_type=jnp.float32), 0.0)

    acc_h = jnp.dot(hsp.astype(jnp.bfloat16), wth_ref[...],
                    preferred_element_type=jnp.float32)               # (1, F)
    acc_x = jnp.dot(ch.astype(jnp.bfloat16), wtx_ref[...],
                    preferred_element_type=jnp.float32)               # (9, F)
    z = jnp.tanh(acc_x + acc_h + mlpb_ref[...])                       # (9, F)

    # attention scores on the VPU (broadcast-mul + lane reduce), softmax over 9
    s = jnp.sum(z * watt_ref[...], axis=-1, keepdims=True)            # (9, 1)
    e = jnp.exp(s - jnp.max(s, axis=0, keepdims=True))
    att = e * pl.reciprocal(jnp.sum(e, axis=0, keepdims=True), approx=True)

    out = x + jnp.sum(att * ch, axis=0, keepdims=True)                # (1, NF)
    o_ref[...] = out.reshape(1, 1, NF)


# ----------------------------------------------------------------------------
# Parameter preprocessing (shared by the kernel wrapper and the references)
# ----------------------------------------------------------------------------
def compute_wavelets(A):
    N = A.shape[0]
    I = jnp.eye(N, dtype=A.dtype)
    P = 0.5 * (I + A / jnp.sum(A * A))     # ||A||_F ** 2
    return I - P, P - P @ P


def build_fused_params(xp, P, N, F, dtype):
    """Kron-fused (column-concatenated) operators + flattened MLP weights."""
    NF = N * F
    cast = lambda a: xp.asarray(a, dtype=dtype)

    def kf(M, W):
        # vec_row(M @ Y @ W) == vec_row(Y) @ kron(M.T, W); eval-mode BN folded in.
        return (BN_SCALE * xp.kron(cast(M).T, cast(W))).astype(dtype)

    k1cat = xp.concatenate([kf(P['adj1'], P['w11']),
                            kf(P['h11'],  P['w12']),
                            kf(P['h12'],  P['w13'])], axis=1)       # (NF, 3NF)
    k2cat = xp.concatenate([kf(P['adj2'], P['w21']),
                            kf(P['h21'],  P['w22']),
                            kf(P['h22'],  P['w23'])], axis=1)       # (NF, 3NF)
    ksp = xp.kron(xp.eye(N, dtype=dtype), cast(P['wsp']))           # (NF, NF)

    # channel_mlp: Linear(2*N*F -> F); its input is interleaved per node as
    # [hsp_n | ch_n], so split the (2NF, F) weight into hsp / x halves.
    wt3 = cast(P['wtT']).reshape(N, 2 * F, F)
    wth = wt3[:, :F, :].reshape(NF, F)
    wtx = wt3[:, F:, :].reshape(NF, F)
    mlpb = cast(P['mlp_b']).reshape(1, F)
    watt = cast(P['watt']).reshape(1, F)
    return k1cat, k2cat, ksp, wth, wtx, mlpb, watt


# ----------------------------------------------------------------------------
# Wrapper
# ----------------------------------------------------------------------------
def gnn_block_pallas(x, P):
    B, N, F = x.shape
    NF = N * F
    k1cat, k2cat, ksp, wth, wtx, mlpb, watt = build_fused_params(
        jnp, P, N, F, jnp.float32)
    # bf16 operators for the MXU path (f32 accumulation inside the kernel);
    # bias / attention vector stay f32 (VPU operands).
    k1cat = k1cat.astype(jnp.bfloat16)
    k2cat = k2cat.astype(jnp.bfloat16)
    ksp = ksp.astype(jnp.bfloat16)
    wth = wth.astype(jnp.bfloat16)
    wtx = wtx.astype(jnp.bfloat16)

    x3 = x.reshape(B, 1, NF).astype(jnp.float32)

    flops = int(B * (2 * NF * 3 * NF            # layer-1 fused matmul
                     + 2 * 3 * NF * 3 * NF      # layer-2 fused matmul
                     + 2 * NF * NF              # H_sp
                     + 2 * NF * F               # channel-MLP (hsp half)
                     + 2 * 9 * NF * F           # channel-MLP (ch half)
                     + 2 * 9 * F                # attention scores
                     + 2 * 9 * NF))             # weighted residual combine
    transcendentals = int(B * (3 * NF + 9 * NF + 9 * F + 9 + 1))
    bytes_accessed = int(x3.size * 4 + B * NF * 4
                         + 2 * (k1cat.size + k2cat.size + ksp.size
                                + wth.size + wtx.size)
                         + 4 * (mlpb.size + watt.size))

    const = lambda shape: pl.BlockSpec(shape, lambda b: (0,) * len(shape))

    out3 = pl.pallas_call(
        gnn_block_kernel,
        out_shape=jax.ShapeDtypeStruct((B, 1, NF), jnp.float32),
        grid=(B,),
        in_specs=[pl.BlockSpec((1, 1, NF), lambda b: (b, 0, 0)),
                  const((NF, 3 * NF)), const((NF, 3 * NF)),
                  const((NF, NF)),
                  const((NF, F)), const((NF, F)),
                  const((1, F)), const((1, F))],
        out_specs=pl.BlockSpec((1, 1, NF), lambda b: (b, 0, 0)),
        compiler_params=pltpu.CompilerParams(dimension_semantics=("parallel",)),
        cost_estimate=pl.CostEstimate(flops=flops,
                                      transcendentals=transcendentals,
                                      bytes_accessed=bytes_accessed),
    )(x3, k1cat, k2cat, ksp, wth, wtx, mlpb, watt)
    return out3.reshape(B, N, F)


# ----------------------------------------------------------------------------
# References
# ----------------------------------------------------------------------------
def fused_forward(xp, x_flat, fused):
    """Mirrors the Pallas kernel math (works with xp = numpy or jax.numpy)."""
    k1cat, k2cat, ksp, wth, wtx, mlpb, watt = fused
    B, NF = x_flat.shape
    outs = []
    for b in range(B):
        xb = x_flat[b:b + 1]
        y1 = xp.tanh(xb @ k1cat)
        y1r = xp.concatenate([y1[:, c * NF:(c + 1) * NF] for c in range(3)], axis=0)
        y2 = xp.tanh(y1r @ k2cat)
        ch = xp.concatenate([y2[:, m * NF:(m + 1) * NF] for m in range(3)], axis=0)
        mean = ch.sum(axis=0, keepdims=True) / 9.0
        hsp = xp.maximum(mean @ ksp, 0.0)
        z = xp.tanh(ch @ wtx + hsp @ wth + mlpb)
        s = (z * watt).sum(axis=-1, keepdims=True)
        e = xp.exp(s - s.max(axis=0, keepdims=True))
        att = e / e.sum(axis=0, keepdims=True)
        outs.append(xb + (att * ch).sum(axis=0, keepdims=True))
    return xp.concatenate(outs, axis=0)


def original_forward_np(x, P):
    """float64 numpy mirror of the PyTorch GNNblock.forward (eval mode)."""
    f64 = lambda a: np.asarray(a, np.float64)
    B, N, F = x.shape

    def scatter(inp, adj, h1, h2, w1, w2, w3):
        C = inp.shape[1]
        xr = inp.reshape(-1, N, F)
        o1 = np.einsum('ij,bjf->bif', adj, xr @ w1) * BN_SCALE
        o2 = np.einsum('ij,bjf->bif', h1,  xr @ w2) * BN_SCALE
        o3 = np.einsum('ij,bjf->bif', h2,  xr @ w3) * BN_SCALE
        cat = np.concatenate([o1.reshape(-1, C, N, F),
                              o2.reshape(-1, C, N, F),
                              o3.reshape(-1, C, N, F)], axis=1)
        return np.tanh(cat)

    y1 = scatter(x[:, None], f64(P['adj1']), f64(P['h11']), f64(P['h12']),
                 f64(P['w11']), f64(P['w12']), f64(P['w13']))          # (B, 3, N, F)
    y2 = scatter(y1, f64(P['adj2']), f64(P['h21']), f64(P['h22']),
                 f64(P['w21']), f64(P['w22']), f64(P['w23']))          # (B, 9, N, F)
    hsp = np.maximum(np.mean(y2 @ f64(P['wsp']), axis=1), 0.0)         # (B, N, F)
    cat = np.concatenate([np.broadcast_to(hsp[:, None], y2.shape), y2], axis=3)
    z = np.tanh(cat.reshape(B, 9, -1) @ f64(P['wtT']) + f64(P['mlp_b']))
    sc = z @ f64(P['watt'])                                            # (B, 9)
    e = np.exp(sc - sc.max(axis=1, keepdims=True))
    att = e / e.sum(axis=1, keepdims=True)
    out = np.einsum('bcf,bc->bf', y2.reshape(B, 9, -1), att).reshape(B, N, F)
    return out + x


# ----------------------------------------------------------------------------
if __name__ == "__main__":
    B, N, F = 2, 16, 8          # batch, feat_dim, in_feat  (N*F = 128 lanes)
    key = jax.random.PRNGKey(0)
    ks = jax.random.split(key, 16)
    stdv = 1.0 / math.sqrt(F)
    mlp_bound = 1.0 / math.sqrt(2 * N * F)

    def u(k, shape, bound):
        return jax.random.uniform(k, shape, jnp.float32, -bound, bound)

    params = dict(
        w11=u(ks[0], (F, F), stdv), w12=u(ks[1], (F, F), stdv), w13=u(ks[2], (F, F), stdv),
        adj1=u(ks[3], (N, N), stdv),
        w21=u(ks[4], (F, F), stdv), w22=u(ks[5], (F, F), stdv), w23=u(ks[6], (F, F), stdv),
        adj2=u(ks[7], (N, N), stdv),
        wsp=u(ks[8], (F, F), stdv),
        watt=u(ks[9], (F,), stdv),
        mlp_w=u(ks[10], (F, 2 * N * F), mlp_bound),   # torch Linear weight (out, in)
        mlp_b=u(ks[11], (F,), mlp_bound),
    )
    params['h11'], params['h12'] = compute_wavelets(params['adj1'])
    params['h21'], params['h22'] = compute_wavelets(params['adj2'])
    params['wtT'] = params['mlp_w'].T                 # (2*N*F, F)

    x = jax.random.normal(ks[12], (B, N, F), jnp.float32)

    out = jax.block_until_ready(gnn_block_pallas(x, params))

    # (A) exact float64 check: fused formulation == original module forward.
    x64 = np.asarray(x, np.float64)
    fused64 = build_fused_params(np, params, N, F, np.float64)
    ref_orig64 = original_forward_np(x64, params)
    ref_fused64 = fused_forward(np, x64.reshape(B, N * F), fused64).reshape(B, N, F)
    np.testing.assert_allclose(ref_fused64, ref_orig64, rtol=1e-9, atol=1e-9)

    # (B) kernel check: Pallas (bf16 operators, f32 accumulation) vs f32 fused
    # reference; tolerance loosened for the bf16 operand rounding.
    fused32 = build_fused_params(jnp, params, N, F, jnp.float32)
    ref_fused32 = fused_forward(jnp, x.reshape(B, N * F).astype(jnp.float32),
                                fused32).reshape(B, N, F)
    np.testing.assert_allclose(np.asarray(out), np.asarray(ref_fused32),
                               rtol=5e-2, atol=5e-2)

    print("KERNEL_OK")
</pallas_src>

<mosaic_0001>
module attributes {stable_mosaic.version = 11 : i64} {
  func.func @gnn_block_kernel(%arg0: i32, %arg1: memref<1x1x128xf32, #tpu.memory_space<vmem>>, %arg2: memref<128x384xbf16, #tpu.memory_space<vmem>>, %arg3: memref<128x384xbf16, #tpu.memory_space<vmem>>, %arg4: memref<128x128xbf16, #tpu.memory_space<vmem>>, %arg5: memref<128x8xbf16, #tpu.memory_space<vmem>>, %arg6: memref<128x8xbf16, #tpu.memory_space<vmem>>, %arg7: memref<1x8xf32, #tpu.memory_space<vmem>>, %arg8: memref<1x8xf32, #tpu.memory_space<vmem>>, %arg9: memref<1x1x128xf32, #tpu.memory_space<vmem>>) attributes {dimension_semantics = [#tpu.dimension_semantics<parallel>], iteration_bounds = array<i64: 2>, scalar_prefetch = 0 : i64, scratch_operands = 0 : i64, tpu.core_type = #tpu.core_type<tc>, window_params = [{transform_indices = @transform_0, window_bounds = array<i64: 1, 1, 128>}, {pipeline_mode = #tpu.pipeline_mode<synchronous>, transform_indices = @transform_1, window_bounds = array<i64: 128, 384>}, {pipeline_mode = #tpu.pipeline_mode<synchronous>, transform_indices = @transform_2, window_bounds = array<i64: 128, 384>}, {pipeline_mode = #tpu.pipeline_mode<synchronous>, transform_indices = @transform_3, window_bounds = array<i64: 128, 128>}, {pipeline_mode = #tpu.pipeline_mode<synchronous>, transform_indices = @transform_4, window_bounds = array<i64: 128, 8>}, {pipeline_mode = #tpu.pipeline_mode<synchronous>, transform_indices = @transform_5, window_bounds = array<i64: 128, 8>}, {pipeline_mode = #tpu.pipeline_mode<synchronous>, transform_indices = @transform_6, window_bounds = array<i64: 1, 8>}, {pipeline_mode = #tpu.pipeline_mode<synchronous>, transform_indices = @transform_7, window_bounds = array<i64: 1, 8>}, {transform_indices = @transform_8, window_bounds = array<i64: 1, 1, 128>}]} {
    %c0 = arith.constant 0 : index
    %c0_0 = arith.constant 0 : index
    %c0_1 = arith.constant 0 : index
    %0 = vector.load %arg1[%c0, %c0_0, %c0_1] : memref<1x1x128xf32, #tpu.memory_space<vmem>>, vector<1x1x128xf32>
    %1 = vector.shape_cast %0 : vector<1x1x128xf32> to vector<1x128xf32>
    %2 = arith.truncf %1 : vector<1x128xf32> to vector<1x128xbf16>
    %c0_2 = arith.constant 0 : index
    %c0_3 = arith.constant 0 : index
    %3 = vector.load %arg2[%c0_2, %c0_3] : memref<128x384xbf16, #tpu.memory_space<vmem>>, vector<128x384xbf16>
    %cst = arith.constant dense<0.000000e+00> : vector<1x384xf32>
    %4 = tpu.matmul %2, %3, %cst {dimension_numbers = #tpu.dot_dimension_numbers<[1], [0], [0], [1], [0, 0, 1, 1], [], []>} : vector<1x128xbf16>, vector<128x384xbf16>, vector<1x384xf32> -> vector<1x384xf32>
    %5 = math.tanh %4 : vector<1x384xf32>
    %6 = vector.extract_strided_slice %5 {offsets = [0, 0], sizes = [1, 128], strides = [1, 1]} : vector<1x384xf32> to vector<1x128xf32>
    %7 = vector.extract_strided_slice %5 {offsets = [0, 128], sizes = [1, 128], strides = [1, 1]} : vector<1x384xf32> to vector<1x128xf32>
    %8 = vector.extract_strided_slice %5 {offsets = [0, 256], sizes = [1, 128], strides = [1, 1]} : vector<1x384xf32> to vector<1x128xf32>
    %9 = tpu.concatenate %6, %7, %8 in 0 : vector<1x128xf32>, vector<1x128xf32>, vector<1x128xf32> -> vector<3x128xf32>
    %10 = arith.truncf %9 : vector<3x128xf32> to vector<3x128xbf16>
    %c0_4 = arith.constant 0 : index
    %c0_5 = arith.constant 0 : index
    %11 = vector.load %arg3[%c0_4, %c0_5] : memref<128x384xbf16, #tpu.memory_space<vmem>>, vector<128x384xbf16>
    %cst_6 = arith.constant dense<0.000000e+00> : vector<3x384xf32>
    %12 = tpu.matmul %10, %11, %cst_6 {dimension_numbers = #tpu.dot_dimension_numbers<[1], [0], [0], [1], [0, 0, 1, 1], [], []>} : vector<3x128xbf16>, vector<128x384xbf16>, vector<3x384xf32> -> vector<3x384xf32>
    %13 = math.tanh %12 : vector<3x384xf32>
    %14 = vector.extract_strided_slice %13 {offsets = [0, 0], sizes = [3, 128], strides = [1, 1]} : vector<3x384xf32> to vector<3x128xf32>
    %15 = vector.extract_strided_slice %13 {offsets = [0, 128], sizes = [3, 128], strides = [1, 1]} : vector<3x384xf32> to vector<3x128xf32>
    %16 = vector.extract_strided_slice %13 {offsets = [0, 256], sizes = [3, 128], strides = [1, 1]} : vector<3x384xf32> to vector<3x128xf32>
    %17 = tpu.concatenate %14, %15, %16 in 0 : vector<3x128xf32>, vector<3x128xf32>, vector<3x128xf32> -> vector<9x128xf32>
    %cst_7 = arith.constant dense<0.000000e+00> : vector<128xf32>
    %18 = vector.multi_reduction <add>, %17, %cst_7 [0] : vector<9x128xf32> to vector<128xf32>
    %19 = vector.shape_cast %18 : vector<128xf32> to vector<1x128xf32>
    %cst_8 = arith.constant 0.111111112 : f32
    %20 = vector.broadcast %cst_8 : f32 to vector<1x128xf32>
    %21 = arith.mulf %19, %20 : vector<1x128xf32>
    %22 = arith.truncf %21 : vector<1x128xf32> to vector<1x128xbf16>
    %c0_9 = arith.constant 0 : index
    %c0_10 = arith.constant 0 : index
    %23 = vector.load %arg4[%c0_9, %c0_10] : memref<128x128xbf16, #tpu.memory_space<vmem>>, vector<128x128xbf16>
    %cst_11 = arith.constant dense<0.000000e+00> : vector<1x128xf32>
    %24 = tpu.matmul %22, %23, %cst_11 {dimension_numbers = #tpu.dot_dimension_numbers<[1], [0], [0], [1], [0, 0, 1, 1], [], []>} : vector<1x128xbf16>, vector<128x128xbf16>, vector<1x128xf32> -> vector<1x128xf32>
    %cst_12 = arith.constant 0.000000e+00 : f32
    %25 = vector.broadcast %cst_12 : f32 to vector<1x128xf32>
    %26 = arith.maximumf %24, %25 : vector<1x128xf32>
    %27 = arith.truncf %26 : vector<1x128xf32> to vector<1x128xbf16>
    %c0_13 = arith.constant 0 : index
    %c0_14 = arith.constant 0 : index
    %28 = vector.load %arg5[%c0_13, %c0_14] : memref<128x8xbf16, #tpu.memory_space<vmem>>, vector<128x8xbf16>
    %cst_15 = arith.constant dense<0.000000e+00> : vector<1x8xf32>
    %29 = tpu.matmul %27, %28, %cst_15 {dimension_numbers = #tpu.dot_dimension_numbers<[1], [0], [0], [1], [0, 0, 1, 1], [], []>} : vector<1x128xbf16>, vector<128x8xbf16>, vector<1x8xf32> -> vector<1x8xf32>
    %30 = arith.truncf %17 : vector<9x128xf32> to vector<9x128xbf16>
    %c0_16 = arith.constant 0 : index
    %c0_17 = arith.constant 0 : index
    %31 = vector.load %arg6[%c0_16, %c0_17] : memref<128x8xbf16, #tpu.memory_space<vmem>>, vector<128x8xbf16>
    %cst_18 = arith.constant dense<0.000000e+00> : vector<9x8xf32>
    %32 = tpu.matmul %30, %31, %cst_18 {dimension_numbers = #tpu.dot_dimension_numbers<[1], [0], [0], [1], [0, 0, 1, 1], [], []>} : vector<9x128xbf16>, vector<128x8xbf16>, vector<9x8xf32> -> vector<9x8xf32>
    %33 = vector.broadcast %29 : vector<1x8xf32> to vector<9x8xf32>
    %34 = arith.addf %32, %33 : vector<9x8xf32>
    %c0_19 = arith.constant 0 : index
    %c0_20 = arith.constant 0 : index
    %35 = vector.load %arg7[%c0_19, %c0_20] : memref<1x8xf32, #tpu.memory_space<vmem>>, vector<1x8xf32>
    %36 = vector.broadcast %35 : vector<1x8xf32> to vector<9x8xf32>
    %37 = arith.addf %34, %36 : vector<9x8xf32>
    %38 = math.tanh %37 : vector<9x8xf32>
    %c0_21 = arith.constant 0 : index
    %c0_22 = arith.constant 0 : index
    %39 = vector.load %arg8[%c0_21, %c0_22] : memref<1x8xf32, #tpu.memory_space<vmem>>, vector<1x8xf32>
    %40 = vector.broadcast %39 : vector<1x8xf32> to vector<9x8xf32>
    %41 = arith.mulf %38, %40 : vector<9x8xf32>
    %cst_23 = arith.constant dense<0.000000e+00> : vector<9xf32>
    %42 = vector.multi_reduction <add>, %41, %cst_23 [1] : vector<9x8xf32> to vector<9xf32>
    %43 = vector.shape_cast %42 : vector<9xf32> to vector<9x1xf32>
    %cst_24 = arith.constant dense<0xFF800000> : vector<1xf32>
    %44 = vector.multi_reduction <maximumf>, %43, %cst_24 [0] : vector<9x1xf32> to vector<1xf32>
    %45 = vector.shape_cast %44 : vector<1xf32> to vector<1x1xf32>
    %46 = vector.broadcast %45 : vector<1x1xf32> to vector<9x1xf32>
    %47 = arith.subf %43, %46 : vector<9x1xf32>
    %48 = math.exp %47 : vector<9x1xf32>
    %cst_25 = arith.constant dense<0.000000e+00> : vector<1xf32>
    %49 = vector.multi_reduction <add>, %48, %cst_25 [0] : vector<9x1xf32> to vector<1xf32>
    %50 = vector.shape_cast %49 : vector<1xf32> to vector<1x1xf32>
    %51 = tpu.reciprocal %50 {approx = true} : vector<1x1xf32> -> vector<1x1xf32>
    %52 = vector.broadcast %51 : vector<1x1xf32> to vector<9x1xf32>
    %53 = arith.mulf %48, %52 : vector<9x1xf32>
    %54 = vector.broadcast %53 : vector<9x1xf32> to vector<9x128xf32>
    %55 = arith.mulf %54, %17 : vector<9x128xf32>
    %cst_26 = arith.constant dense<0.000000e+00> : vector<128xf32>
    %56 = vector.multi_reduction <add>, %55, %cst_26 [0] : vector<9x128xf32> to vector<128xf32>
    %57 = vector.shape_cast %56 : vector<128xf32> to vector<1x128xf32>
    %58 = arith.addf %1, %57 : vector<1x128xf32>
    %59 = vector.shape_cast %58 : vector<1x128xf32> to vector<1x1x128xf32>
    %c0_27 = arith.constant 0 : index
    %c0_28 = arith.constant 0 : index
    %c0_29 = arith.constant 0 : index
    %60 = vector.load %arg9[%c0_27, %c0_28, %c0_29] : memref<1x1x128xf32, #tpu.memory_space<vmem>>, vector<1x1x128xf32>
    tpu.vector_store %arg9[%c0_27, %c0_28, %c0_29], %59 {strides = array<i32>} : memref<1x1x128xf32, #tpu.memory_space<vmem>>, vector<1x1x128xf32>,
    return
  }
  func.func @transform_0(%arg0: i32) -> (i32, i32, i32) {
    %c0_i32 = arith.constant 0 : i32
    %c0_i32_0 = arith.constant 0 : i32
    %c0_i32_1 = arith.constant 0 : i32
    return %arg0, %c0_i32, %c0_i32_0 : i32, i32, i32
  }
  func.func @transform_1(%arg0: i32) -> (i32, i32) {
    %c0_i32 = arith.constant 0 : i32
    %c0_i32_0 = arith.constant 0 : i32
    %c0_i32_1 = arith.constant 0 : i32
    return %c0_i32, %c0_i32_0 : i32, i32
  }
  func.func @transform_2(%arg0: i32) -> (i32, i32) {
    %c0_i32 = arith.constant 0 : i32
    %c0_i32_0 = arith.constant 0 : i32
    %c0_i32_1 = arith.constant 0 : i32
    return %c0_i32, %c0_i32_0 : i32, i32
  }
  func.func @transform_3(%arg0: i32) -> (i32, i32) {
    %c0_i32 = arith.constant 0 : i32
    %c0_i32_0 = arith.constant 0 : i32
    %c0_i32_1 = arith.constant 0 : i32
    return %c0_i32, %c0_i32_0 : i32, i32
  }
  func.func @transform_4(%arg0: i32) -> (i32, i32) {
    %c0_i32 = arith.constant 0 : i32
    %c0_i32_0 = arith.constant 0 : i32
    %c0_i32_1 = arith.constant 0 : i32
    return %c0_i32, %c0_i32_0 : i32, i32
  }
  func.func @transform_5(%arg0: i32) -> (i32, i32) {
    %c0_i32 = arith.constant 0 : i32
    %c0_i32_0 = arith.constant 0 : i32
    %c0_i32_1 = arith.constant 0 : i32
    return %c0_i32, %c0_i32_0 : i32, i32
  }
  func.func @transform_6(%arg0: i32) -> (i32, i32) {
    %c0_i32 = arith.constant 0 : i32
    %c0_i32_0 = arith.constant 0 : i32
    %c0_i32_1 = arith.constant 0 : i32
    return %c0_i32, %c0_i32_0 : i32, i32
  }
  func.func @transform_7(%arg0: i32) -> (i32, i32) {
    %c0_i32 = arith.constant 0 : i32
    %c0_i32_0 = arith.constant 0 : i32
    %c0_i32_1 = arith.constant 0 : i32
    return %c0_i32, %c0_i32_0 : i32, i32
  }
  func.func @transform_8(%arg0: i32) -> (i32, i32, i32) {
    %c0_i32 = arith.constant 0 : i32
    %c0_i32_0 = arith.constant 0 : i32
    %c0_i32_1 = arith.constant 0 : i32
    return %arg0, %c0_i32, %c0_i32_0 : i32, i32, i32
  }
}

</mosaic_0001>

<llo_original>
// kernel: tpu_custom_call.1
$region0: #{tpu_custom_call.1}
  #allocation0 [shape = 'u32[]', space=smem, size = 0x4, offset = 0x4, fixed_abs, tag = 'smem constant byte address 0x4 - core index']
  #allocation1 [shape = 'u32[72,128]{1,0:T(1,128)}', space=vmem, size = 0x9000, scoped, tag = 'internal scratch']
  %s0 = inlined_call_operand.vmem [shape: f32[2,1,128], index: 0, kind: input, shape index: {}]
  %s1 = inlined_call_operand.hbm [shape: bf16[128,384], index: 1, kind: input, shape index: {}]
  %s2 = inlined_call_operand.hbm [shape: bf16[128,384], index: 2, kind: input, shape index: {}]
  %s3 = inlined_call_operand.vmem [shape: bf16[128,128], index: 3, kind: input, shape index: {}]
  %s4 = inlined_call_operand.vmem [shape: bf16[128,8], index: 4, kind: input, shape index: {}]
  %s5 = inlined_call_operand.vmem [shape: bf16[128,8], index: 5, kind: input, shape index: {}]
  %s6 = inlined_call_operand.vmem [shape: f32[1,8], index: 6, kind: input, shape index: {}]
  %s7 = inlined_call_operand.vmem [shape: f32[1,8], index: 7, kind: input, shape index: {}]
  %s8 = inlined_call_operand.hbm [shape: f32[2,1,128], index: 8, kind: output, shape index: {}]
  %s9 = sld [smem:[#allocation0]]
  $region73: #{tpu_custom_call.1} parent=0
    _
  %s11 = ssub.s32 1, %s9
  %s12 = scalar_select 0, %s11, %s9
  $region1: #{tpu_custom_call.1} parent=0
    #allocation2 [shape = 'u8[98304]{0}', space=vmem, size = 0x18000, scoped, tag = 'input window, operand 1, single buffered']
    #allocation3 [shape = 's32[2]{0}', space=sflag, size = 0x8, scoped, tag = 'scoped memory for tpu_custom_call.1']
    #allocation4 [shape = 's32[2]{0}', space=sflag, size = 0x8, scoped, tag = 'scoped memory for tpu_custom_call.1']
    #allocation5 [shape = 'u8[98304]{0}', space=vmem, size = 0x18000, scoped, tag = 'input window, operand 2, single buffered']
    #allocation6 [shape = 's32[1]{0}', space=sflag, size = 0x4, scoped, tag = 'scoped memory for tpu_custom_call.1']
    #allocation7 [shape = 'u8[1024]{0}', space=vmem, size = 0x400, scoped, tag = 'output window, operand 0']
    %13 = vsyncpa [#allocation3], 0
    %14 = vsyncpa [#allocation6], 0
    %15 = vsyncpa [#allocation4], 0
    %s16 = scalar_lea.sflag [#allocation4], 1
    %17 = vsyncpa %s16, 0
    loop: start=0, step=1, limit=4
    $region2: #{tpu_custom_call.1} parent=1 // loop_pre_header
      _
    $region3: #{tpu_custom_call.1} parent=1 // loop_header
      %s19 = sphi 0, %s23
      %p20 = scmp.ge.s32.totalorder %s19, 4
      %s29 = sphi 0, %s31
      %s32 = sphi 0, %s29
      %s33 = sphi 0, %s32
      %s49 = sphi 0, %s33
      %s53 = sphi 0, %s53
      %s55 = sphi 0, %s53
      %s56 = sphi 0, %s55
      %s70 = sphi 0, %s56
      %s74 = sphi 0, %s74
      %s76 = sphi 0, %s74
      %s77 = sphi 0, %s76
      %s91 = sphi 0, %s77
      %s95 = sphi 0, %s95
      %s97 = sphi 0, %s95
      %s98 = sphi 0, %s97
      %s112 = sphi 0, %s98
      %s116 = sphi 0, %s116
      %s118 = sphi 0, %s116
      %s119 = sphi 0, %s118
      %s133 = sphi 0, %s119
      %s137 = sphi 0, %s137
      %s139 = sphi 0, %s137
      %s140 = sphi 0, %s139
      %s154 = sphi 0, %s140
      %s158 = sphi 0, %s158
      %s160 = sphi 0, %s158
      %s161 = sphi 0, %s160
      %s175 = sphi 0, %s161
      %s179 = sphi 0, %s179
      %s181 = sphi 0, %s179
      %s182 = sphi 0, %s181
      %s196 = sphi 0, %s182
      %s202 = sphi 0, %s204
      %s205 = sphi 0, %s202
      %s206 = sphi 0, %s205
      %s222 = sphi 0, %s206
    $region4: #{tpu_custom_call.1} parent=1 // loop_header_branch
      %22 = sbr.rel (%p20) target = $region8
    $region5: #{tpu_custom_call.1} parent=1 // loop_body
      %s24 = ssub.s32 %s19, 1
      %s25 = ssub.s32 %s19, 2
      %s26 = sadd.s32 %s19, 1
      %s27 = ssub.s32 %s19, %s26
      %p28 = scmp.eq.s32.totalorder %s27, 0
      %s30 = sadd.s32 %s29, 1
      %s31 = scalar_select %p28, %s29, %s30
      %p34 = pneg %p28
      %p35 = scmp.eq.s32.totalorder %s19, 1
      %p36 = por %p34, %p35
      %p37 = scmp.ne.s32.totalorder %s29, %s32
      %p38 = scmp.eq.s32.totalorder %s19, 0
      %p39 = por %p37, %p38
      %p40 = scmp.ne.s32.totalorder %s29, %s32
      %p41 = scmp.eq.s32.totalorder %s24, 1
      %p42 = por %p40, %p41
      %p43 = scmp.ne.s32.totalorder %s32, %s33
      %p44 = scmp.eq.s32.totalorder %s24, 0
      %p45 = por %p43, %p44
      %p46 = scmp.ne.s32.totalorder %s32, %s33
      %p47 = scmp.eq.s32.totalorder %s25, 1
      %p48 = por %p46, %p47
      %p50 = scmp.ne.s32.totalorder %s33, %s49
      %p51 = scmp.eq.s32.totalorder %s25, 0
      %p52 = por %p50, %p51
      %s54 = sadd.s32 %s53, 1
      %p57 = scmp.eq.s32.totalorder %s19, 1
      %p58 = scmp.ne.s32.totalorder %s53, %s55
      %p59 = scmp.eq.s32.totalorder %s19, 0
      %p60 = por %p58, %p59
      %p61 = scmp.ne.s32.totalorder %s53, %s55
      %p62 = scmp.eq.s32.totalorder %s24, 1
      %p63 = por %p61, %p62
      %p64 = scmp.ne.s32.totalorder %s55, %s56
      %p65 = scmp.eq.s32.totalorder %s24, 0
      %p66 = por %p64, %p65
      %p67 = scmp.ne.s32.totalorder %s55, %s56
      %p68 = scmp.eq.s32.totalorder %s25, 1
      %p69 = por %p67, %p68
      %p71 = scmp.ne.s32.totalorder %s56, %s70
      %p72 = scmp.eq.s32.totalorder %s25, 0
      %p73 = por %p71, %p72
      %s75 = sadd.s32 %s74, 1
      %p78 = scmp.eq.s32.totalorder %s19, 1
      %p79 = scmp.ne.s32.totalorder %s74, %s76
      %p80 = scmp.eq.s32.totalorder %s19, 0
      %p81 = por %p79, %p80
      %p82 = scmp.ne.s32.totalorder %s74, %s76
      %p83 = scmp.eq.s32.totalorder %s24, 1
      %p84 = por %p82, %p83
      %p85 = scmp.ne.s32.totalorder %s76, %s77
      %p86 = scmp.eq.s32.totalorder %s24, 0
      %p87 = por %p85, %p86
      %p88 = scmp.ne.s32.totalorder %s76, %s77
      %p89 = scmp.eq.s32.totalorder %s25, 1
      %p90 = por %p88, %p89
      %p92 = scmp.ne.s32.totalorder %s77, %s91
      %p93 = scmp.eq.s32.totalorder %s25, 0
      %p94 = por %p92, %p93
      %s96 = sadd.s32 %s95, 1
      %p99 = scmp.eq.s32.totalorder %s19, 1
      %p100 = scmp.ne.s32.totalorder %s95, %s97
      %p101 = scmp.eq.s32.totalorder %s19, 0
      %p102 = por %p100, %p101
      %p103 = scmp.ne.s32.totalorder %s95, %s97
      %p104 = scmp.eq.s32.totalorder %s24, 1
      %p105 = por %p103, %p104
      %p106 = scmp.ne.s32.totalorder %s97, %s98
      %p107 = scmp.eq.s32.totalorder %s24, 0
      %p108 = por %p106, %p107
      %p109 = scmp.ne.s32.totalorder %s97, %s98
      %p110 = scmp.eq.s32.totalorder %s25, 1
      %p111 = por %p109, %p110
      %p113 = scmp.ne.s32.totalorder %s98, %s112
      %p114 = scmp.eq.s32.totalorder %s25, 0
      %p115 = por %p113, %p114
      %s117 = sadd.s32 %s116, 1
      %p120 = scmp.eq.s32.totalorder %s19, 1
      %p121 = scmp.ne.s32.totalorder %s116, %s118
      %p122 = scmp.eq.s32.totalorder %s19, 0
      %p123 = por %p121, %p122
      %p124 = scmp.ne.s32.totalorder %s116, %s118
      %p125 = scmp.eq.s32.totalorder %s24, 1
      %p126 = por %p124, %p125
      %p127 = scmp.ne.s32.totalorder %s118, %s119
      %p128 = scmp.eq.s32.totalorder %s24, 0
      %p129 = por %p127, %p128
      %p130 = scmp.ne.s32.totalorder %s118, %s119
      %p131 = scmp.eq.s32.totalorder %s25, 1
      %p132 = por %p130, %p131
      %p134 = scmp.ne.s32.totalorder %s119, %s133
      %p135 = scmp.eq.s32.totalorder %s25, 0
      %p136 = por %p134, %p135
      %s138 = sadd.s32 %s137, 1
      %p141 = scmp.eq.s32.totalorder %s19, 1
      %p142 = scmp.ne.s32.totalorder %s137, %s139
      %p143 = scmp.eq.s32.totalorder %s19, 0
      %p144 = por %p142, %p143
      %p145 = scmp.ne.s32.totalorder %s137, %s139
      %p146 = scmp.eq.s32.totalorder %s24, 1
      %p147 = por %p145, %p146
      %p148 = scmp.ne.s32.totalorder %s139, %s140
      %p149 = scmp.eq.s32.totalorder %s24, 0
      %p150 = por %p148, %p149
      %p151 = scmp.ne.s32.totalorder %s139, %s140
      %p152 = scmp.eq.s32.totalorder %s25, 1
      %p153 = por %p151, %p152
      %p155 = scmp.ne.s32.totalorder %s140, %s154
      %p156 = scmp.eq.s32.totalorder %s25, 0
      %p157 = por %p155, %p156
      %s159 = sadd.s32 %s158, 1
      %p162 = scmp.eq.s32.totalorder %s19, 1
      %p163 = scmp.ne.s32.totalorder %s158, %s160
      %p164 = scmp.eq.s32.totalorder %s19, 0
      %p165 = por %p163, %p164
      %p166 = scmp.ne.s32.totalorder %s158, %s160
      %p167 = scmp.eq.s32.totalorder %s24, 1
      %p168 = por %p166, %p167
      %p169 = scmp.ne.s32.totalorder %s160, %s161
      %p170 = scmp.eq.s32.totalorder %s24, 0
      %p171 = por %p169, %p170
      %p172 = scmp.ne.s32.totalorder %s160, %s161
      %p173 = scmp.eq.s32.totalorder %s25, 1
      %p174 = por %p172, %p173
      %p176 = scmp.ne.s32.totalorder %s161, %s175
      %p177 = scmp.eq.s32.totalorder %s25, 0
      %p178 = por %p176, %p177
      %s180 = sadd.s32 %s179, 1
      %p183 = scmp.eq.s32.totalorder %s19, 1
      %p184 = scmp.ne.s32.totalorder %s179, %s181
      %p185 = scmp.eq.s32.totalorder %s19, 0
      %p186 = por %p184, %p185
      %p187 = scmp.ne.s32.totalorder %s179, %s181
      %p188 = scmp.eq.s32.totalorder %s24, 1
      %p189 = por %p187, %p188
      %p190 = scmp.ne.s32.totalorder %s181, %s182
      %p191 = scmp.eq.s32.totalorder %s24, 0
      %p192 = por %p190, %p191
      %p193 = scmp.ne.s32.totalorder %s181, %s182
      %p194 = scmp.eq.s32.totalorder %s25, 1
      %p195 = por %p193, %p194
      %p197 = scmp.ne.s32.totalorder %s182, %s196
      %p198 = scmp.eq.s32.totalorder %s25, 0
      %p199 = por %p197, %p198
      %s200 = ssub.s32 %s19, %s26
      %p201 = scmp.eq.s32.totalorder %s200, 0
      %s203 = sadd.s32 %s202, 1
      %s204 = scalar_select %p201, %s202, %s203
      %p207 = pneg %p201
      %p208 = scmp.eq.s32.totalorder %s19, 1
      %p209 = por %p207, %p208
      %p210 = scmp.ne.s32.totalorder %s202, %s205
      %p211 = scmp.eq.s32.totalorder %s19, 0
      %p212 = por %p210, %p211
      %p213 = scmp.ne.s32.totalorder %s202, %s205
      %p214 = scmp.eq.s32.totalorder %s24, 1
      %p215 = por %p213, %p214
      %p216 = scmp.ne.s32.totalorder %s205, %s206
      %p217 = scmp.eq.s32.totalorder %s24, 0
      %p218 = por %p216, %p217
      %p219 = scmp.ne.s32.totalorder %s205, %s206
      %p220 = scmp.eq.s32.totalorder %s25, 1
      %p221 = por %p219, %p220
      %p223 = scmp.ne.s32.totalorder %s206, %s222
      %p224 = scmp.eq.s32.totalorder %s25, 0
      %p225 = por %p223, %p224
      %p226 = scmp.le.s32.totalorder 1, %s19
      %p227 = scmp.lt.s32.totalorder %s19, 3
      %p228 = pnand %p226, %p227
      %p229 = pneg %p228
      // Predicated region
      $region9: #{tpu_custom_call.1} parent=5 // pred_check
        _
      $region10: #{tpu_custom_call.1} parent=5 // pred_check_branch
        %231 = sbr.rel (%p228) target = $region12
      $region11: #{tpu_custom_call.1} parent=5 // pred_region
        %s232 = ssub.s32 %s19, 1
        // Predicated region
        $region13: #{tpu_custom_call.1} parent=11 // pred_check
          %p233 = pneg %p66
        $region14: #{tpu_custom_call.1} parent=11 // pred_check_branch
          %235 = sbr.rel (%p233) target = $region16
        $region15: #{tpu_custom_call.1} parent=11 // pred_region
          %237 = vsyncadd [#allocation3], 0
          %s238 = sshll.u32 %s1, 4
          %s239 = int_to_ptr.hbm [resolvable:$true] %s238
          %s240 = sshll.u32 [#allocation2], 4
          %s241 = int_to_ptr.vmem [resolvable:$true] %s240
          %246 = dma.hbm_to_vmem [thread:$0]  %s239, 3072, %s241, [#allocation3], 192, 192, 12
        $region16: #{tpu_custom_call.1} parent=11 // pred_fallthru
          _
        // Predicated region
        $region17: #{tpu_custom_call.1} parent=11 // pred_check
          %p247 = pneg %p87
        $region18: #{tpu_custom_call.1} parent=11 // pred_check_branch
          %249 = sbr.rel (%p247) target = $region20
        $region19: #{tpu_custom_call.1} parent=11 // pred_region
          %251 = vsyncadd [#allocation6], 0
          %s252 = sshll.u32 %s2, 4
          %s253 = int_to_ptr.hbm [resolvable:$true] %s252
          %s254 = sshll.u32 [#allocation5], 4
          %s255 = int_to_ptr.vmem [resolvable:$true] %s254
          %260 = dma.hbm_to_vmem [thread:$0]  %s253, 3072, %s255, [#allocation6], 192, 192, 12
        $region20: #{tpu_custom_call.1} parent=11 // pred_fallthru
          _
        // Predicated region
        $region21: #{tpu_custom_call.1} parent=11 // pred_check
          %p261 = pneg %p108
        $region22: #{tpu_custom_call.1} parent=11 // pred_check_branch
          %263 = sbr.rel (%p261) target = $region24
        $region23: #{tpu_custom_call.1} parent=11 // pred_region
          _
        $region24: #{tpu_custom_call.1} parent=11 // pred_fallthru
          _
        // Predicated region
        $region25: #{tpu_custom_call.1} parent=11 // pred_check
          %p264 = pneg %p129
        $region26: #{tpu_custom_call.1} parent=11 // pred_check_branch
          %266 = sbr.rel (%p264) target = $region28
        $region27: #{tpu_custom_call.1} parent=11 // pred_region
          _
        $region28: #{tpu_custom_call.1} parent=11 // pred_fallthru
          _
        // Predicated region
        $region29: #{tpu_custom_call.1} parent=11 // pred_check
          %p267 = pneg %p150
        $region30: #{tpu_custom_call.1} parent=11 // pred_check_branch
          %269 = sbr.rel (%p267) target = $region32
        $region31: #{tpu_custom_call.1} parent=11 // pred_region
          _
        $region32: #{tpu_custom_call.1} parent=11 // pred_fallthru
          _
        // Predicated region
        $region33: #{tpu_custom_call.1} parent=11 // pred_check
          %p270 = pneg %p171
        $region34: #{tpu_custom_call.1} parent=11 // pred_check_branch
          %272 = sbr.rel (%p270) target = $region36
        $region35: #{tpu_custom_call.1} parent=11 // pred_region
          _
        $region36: #{tpu_custom_call.1} parent=11 // pred_fallthru
          _
        // Predicated region
        $region37: #{tpu_custom_call.1} parent=11 // pred_check
          %p273 = pneg %p192
        $region38: #{tpu_custom_call.1} parent=11 // pred_check_branch
          %275 = sbr.rel (%p273) target = $region40
        $region39: #{tpu_custom_call.1} parent=11 // pred_region
          _
        $region40: #{tpu_custom_call.1} parent=11 // pred_fallthru
          _
      $region12: #{tpu_custom_call.1} parent=5 // pred_fallthru
        _
      %p276 = scmp.lt.s32.totalorder %s19, 2
      // Predicated region
      $region41: #{tpu_custom_call.1} parent=5 // pred_check
        %p277 = pneg %p276
      $region42: #{tpu_custom_call.1} parent=5 // pred_check_branch
        %279 = sbr.rel (%p277) target = $region44
      $region43: #{tpu_custom_call.1} parent=5 // pred_region
        // Predicated region
        $region45: #{tpu_custom_call.1} parent=43 // pred_check
          %p280 = pneg %p39
        $region46: #{tpu_custom_call.1} parent=43 // pred_check_branch
          %282 = sbr.rel (%p280) target = $region48
        $region47: #{tpu_custom_call.1} parent=43 // pred_region
          %p283 = scmp.lt.s32.totalorder %s19, 1
          %s284 = scalar_select %p283, %s19, 1
          %s285 = scalar_lea.vmem %s0, %s284
        $region48: #{tpu_custom_call.1} parent=43 // pred_fallthru
          _
      $region44: #{tpu_custom_call.1} parent=5 // pred_fallthru
        _
      %p286 = scmp.le.s32.totalorder 1, %s19
      %p287 = scmp.lt.s32.totalorder %s19, 3
      %p288 = pnand %p286, %p287
      %p289 = pneg %p288
      // Predicated region
      $region49: #{tpu_custom_call.1} parent=5 // pred_check
        _
      $region50: #{tpu_custom_call.1} parent=5 // pred_check_branch
        %291 = sbr.rel (%p288) target = $region52
      $region51: #{tpu_custom_call.1} parent=5 // pred_region
        %s292 = ssub.s32 %s19, 1
        // Predicated region
        $region53: #{tpu_custom_call.1} parent=51 // pred_check
          %p293 = pneg %p66
        $region54: #{tpu_custom_call.1} parent=51 // pred_check_branch
          %295 = sbr.rel (%p293) target = $region56
        $region55: #{tpu_custom_call.1} parent=51 // pred_region
          %297 = dma.done [#allocation3], 3072
        $region56: #{tpu_custom_call.1} parent=51 // pred_fallthru
          _
        // Predicated region
        $region57: #{tpu_custom_call.1} parent=51 // pred_check
          %p298 = pneg %p87
        $region58: #{tpu_custom_call.1} parent=51 // pred_check_branch
          %300 = sbr.rel (%p298) target = $region60
        $region59: #{tpu_custom_call.1} parent=51 // pred_region
          %302 = dma.done [#allocation6], 3072
        $region60: #{tpu_custom_call.1} parent=51 // pred_fallthru
          _
        %p303 = scmp.lt.s32.totalorder %s24, 1
        %s304 = scalar_select %p303, %s24, 1
        %s305 = scalar_lea.vmem %s0, %s304
        %p306 = pneg %p45
        %p307 = pneg %p42
        %p308 = pneg %p66
        %p309 = pneg %p63
        %p310 = pneg %p87
        %p311 = pneg %p84
        %p312 = pneg %p108
        %p313 = pneg %p105
        %p314 = pneg %p129
        %p315 = pneg %p126
        %p316 = pneg %p150
        %p317 = pneg %p147
        %p318 = pneg %p171
        %p319 = pneg %p168
        %p320 = pneg %p192
        %p321 = pneg %p189
        %p322 = pneg %p218
        %p323 = pneg %p215
        %s324 = sand.u32 %s205, 1
        %s325 = scalar_lea.sflag [#allocation4], %s324
        %s326 = sand.u32 %s205, 1
        %s327 = scalar_lea.vmem [#allocation7], %s326
        %p328 = scmp.lt.s32.totalorder %s24, 1
        %s329 = scalar_select %p328, %s24, 1
        %s330 = scalar_lea.vmem %s0, %s329
        %v331 = vld [vmem:[%s330] sm:$0x1]
        %v332 = vpack.c.bf16 %v331, %v331
        %v333 = vld [vmem:[#allocation2] sm:$0xff]
        %v334 = vld [vmem:[#allocation2 + $0x8] sm:$0xf]
        %v335 = vld [vmem:[#allocation2 + $0xc] sm:$0xff]
        %v336 = vld [vmem:[#allocation2 + $0x14] sm:$0xf]
        %v337 = vld [vmem:[#allocation2 + $0x18] sm:$0xff]
        %v338 = vld [vmem:[#allocation2 + $0x20] sm:$0xf]
        %v339 = vld [vmem:[#allocation2 + $0x24] sm:$0xff]
        %v340 = vld [vmem:[#allocation2 + $0x2c] sm:$0xf]
        %v341 = vld [vmem:[#allocation2 + $0x30] sm:$0xff]
        %v342 = vld [vmem:[#allocation2 + $0x38] sm:$0xf]
        %v343 = vld [vmem:[#allocation2 + $0x3c] sm:$0xff]
        %v344 = vld [vmem:[#allocation2 + $0x44] sm:$0xf]
        %v345 = vld [vmem:[#allocation2 + $0x48] sm:$0xff]
        %v346 = vld [vmem:[#allocation2 + $0x50] sm:$0xf]
        %v347 = vld [vmem:[#allocation2 + $0x54] sm:$0xff]
        %v348 = vld [vmem:[#allocation2 + $0x5c] sm:$0xf]
        %v349 = vld [vmem:[#allocation2 + $0x60] sm:$0xff]
        %v350 = vld [vmem:[#allocation2 + $0x68] sm:$0xf]
        %v351 = vld [vmem:[#allocation2 + $0x6c] sm:$0xff]
        %v352 = vld [vmem:[#allocation2 + $0x74] sm:$0xf]
        %v353 = vld [vmem:[#allocation2 + $0x78] sm:$0xff]
        %v354 = vld [vmem:[#allocation2 + $0x80] sm:$0xf]
        %v355 = vld [vmem:[#allocation2 + $0x84] sm:$0xff]
        %v356 = vld [vmem:[#allocation2 + $0x8c] sm:$0xf]
        %v357 = vld [vmem:[#allocation2 + $0x90] sm:$0xff]
        %v358 = vld [vmem:[#allocation2 + $0x98] sm:$0xf]
        %v359 = vld [vmem:[#allocation2 + $0x9c] sm:$0xff]
        %v360 = vld [vmem:[#allocation2 + $0xa4] sm:$0xf]
        %v361 = vld [vmem:[#allocation2 + $0xa8] sm:$0xff]
        %v362 = vld [vmem:[#allocation2 + $0xb0] sm:$0xf]
        %v363 = vld [vmem:[#allocation2 + $0xb4] sm:$0xff]
        %v364 = vld [vmem:[#allocation2 + $0xbc] sm:$0xf]
        %v397 = vunpack.c.l.b16 %v333
        %v398 = vunpack.c.h.b16 %v333
        %v399 = vunpack.c.l.b16 %v334
        %v400 = vunpack.c.l.b16 %v335
        %v401 = vunpack.c.h.b16 %v335
        %v402 = vunpack.c.l.b16 %v336
        %v403 = vunpack.c.l.b16 %v337
        %v404 = vunpack.c.h.b16 %v337
        %v405 = vunpack.c.l.b16 %v338
        %v406 = vunpack.c.l.b16 %v339
        %v407 = vunpack.c.h.b16 %v339
        %v408 = vunpack.c.l.b16 %v340
        %v409 = vunpack.c.l.b16 %v341
        %v410 = vunpack.c.h.b16 %v341
        %v411 = vunpack.c.l.b16 %v342
        %v412 = vunpack.c.l.b16 %v343
        %v413 = vunpack.c.h.b16 %v343
        %v414 = vunpack.c.l.b16 %v344
        %v415 = vunpack.c.l.b16 %v345
        %v416 = vunpack.c.h.b16 %v345
        %v417 = vunpack.c.l.b16 %v346
        %v418 = vunpack.c.l.b16 %v347
        %v419 = vunpack.c.h.b16 %v347
        %v420 = vunpack.c.l.b16 %v348
        %v421 = vunpack.c.l.b16 %v349
        %v422 = vunpack.c.h.b16 %v349
        %v423 = vunpack.c.l.b16 %v350
        %v424 = vunpack.c.l.b16 %v351
        %v425 = vunpack.c.h.b16 %v351
        %v426 = vunpack.c.l.b16 %v352
        %v427 = vunpack.c.l.b16 %v353
        %v428 = vunpack.c.h.b16 %v353
        %v429 = vunpack.c.l.b16 %v354
        %v430 = vunpack.c.l.b16 %v355
        %v431 = vunpack.c.h.b16 %v355
        %v432 = vunpack.c.l.b16 %v356
        %v433 = vunpack.c.l.b16 %v357
        %v434 = vunpack.c.h.b16 %v357
        %v435 = vunpack.c.l.b16 %v358
        %v436 = vunpack.c.l.b16 %v359
        %v437 = vunpack.c.h.b16 %v359
        %v438 = vunpack.c.l.b16 %v360
        %v439 = vunpack.c.l.b16 %v361
        %v440 = vunpack.c.h.b16 %v361
        %v441 = vunpack.c.l.b16 %v362
        %v442 = vunpack.c.l.b16 %v363
        %v443 = vunpack.c.h.b16 %v363
        %v444 = vunpack.c.l.b16 %v364
        %v445 = vpack.c.b16 %v400, %v397
        %v446 = vpack.c.b16 %v401, %v398
        %v447 = vpack.c.b16 %v402, %v399
        %v448 = vpack.c.b16 %v406, %v403
        %v449 = vpack.c.b16 %v407, %v404
        %v450 = vpack.c.b16 %v408, %v405
        %v451 = vpack.c.b16 %v412, %v409
        %v452 = vpack.c.b16 %v413, %v410
        %v453 = vpack.c.b16 %v414, %v411
        %v454 = vpack.c.b16 %v418, %v415
        %v455 = vpack.c.b16 %v419, %v416
        %v456 = vpack.c.b16 %v420, %v417
        %v457 = vpack.c.b16 %v424, %v421
        %v458 = vpack.c.b16 %v425, %v422
        %v459 = vpack.c.b16 %v426, %v423
        %v460 = vpack.c.b16 %v430, %v427
        %v461 = vpack.c.b16 %v431, %v428
        %v462 = vpack.c.b16 %v432, %v429
        %v463 = vpack.c.b16 %v436, %v433
        %v464 = vpack.c.b16 %v437, %v434
        %v465 = vpack.c.b16 %v438, %v435
        %v466 = vpack.c.b16 %v442, %v439
        %v467 = vpack.c.b16 %v443, %v440
        %v468 = vpack.c.b16 %v444, %v441
        %493 = vmatpush.bf16.msra.mxu0 %v466
        %494 = vmatpush.bf16.msra.mxu0 %v463
        %495 = vmatpush.bf16.msra.mxu0 %v460
        %496 = vmatpush.bf16.msra.mxu0 %v457
        %497 = vmatpush.bf16.msra.mxu0 %v454
        %498 = vmatpush.bf16.msra.mxu0 %v451
        %499 = vmatpush.bf16.msra.mxu0 %v448
        %500 = vmatpush.bf16.msra.mxu0 %v445
        %501 = vmatmul.bf16.gmra.mxu0 %v332
        %v502 = vpop.f32.mrf.mxu0
        %v503 = vadd.f32 0.0, %v502
        %v504 = vpop.f32.mrf.mxu0
        %505 = vdwg.mxu0
        %506 = vmatpush.bf16.msra.mxu0 %v467
        %507 = vmatpush.bf16.msra.mxu0 %v464
        %508 = vmatpush.bf16.msra.mxu0 %v461
        %509 = vmatpush.bf16.msra.mxu0 %v458
        %510 = vmatpush.bf16.msra.mxu0 %v455
        %511 = vmatpush.bf16.msra.mxu0 %v452
        %512 = vmatpush.bf16.msra.mxu0 %v449
        %513 = vmatpush.bf16.msra.mxu0 %v446
        %514 = vmatmul.bf16.gmra.mxu0 %v332
        %v515 = vpop.f32.mrf.mxu0
        %v516 = vadd.f32 0.0, %v515
        %v517 = vpop.f32.mrf.mxu0
        %518 = vdwg.mxu0
        %519 = vmatpush.bf16.msra.mxu0 %v468
        %520 = vmatpush.bf16.msra.mxu0 %v465
        %521 = vmatpush.bf16.msra.mxu0 %v462
        %522 = vmatpush.bf16.msra.mxu0 %v459
        %523 = vmatpush.bf16.msra.mxu0 %v456
        %524 = vmatpush.bf16.msra.mxu0 %v453
        %525 = vmatpush.bf16.msra.mxu0 %v450
        %526 = vmatpush.bf16.msra.mxu0 %v447
        %527 = vmatmul.bf16.gmra.mxu0 %v332
        %v528 = vpop.f32.mrf.mxu0
        %v529 = vadd.f32 0.0, %v528
        %v530 = vpop.f32.mrf.mxu0
        %531 = vdwg.mxu0
        %v532 = vtanh.pop %v503
        %v533 = vtanh.pop %v516
        %v534 = vtanh.pop %v529
        %v536 = vrot.slane %v533, 7
        %v539 = vrot.slane %v534, 6
        %vm541 = vcmask 1040384
        %v542 = vsel %vm541, %v532, %v536
        %vm543 = vcmask 1041408
        %v544 = vsel %vm543, %v542, %v539
        %v545 = vpack.c.bf16 %v544, %v544
        %v546 = vld [vmem:[#allocation5] sm:$0xff]
        %v547 = vld [vmem:[#allocation5 + $0x8] sm:$0xf]
        %v548 = vld [vmem:[#allocation5 + $0xc] sm:$0xff]
        %v549 = vld [vmem:[#allocation5 + $0x14] sm:$0xf]
        %v550 = vld [vmem:[#allocation5 + $0x18] sm:$0xff]
        %v551 = vld [vmem:[#allocation5 + $0x20] sm:$0xf]
        %v552 = vld [vmem:[#allocation5 + $0x24] sm:$0xff]
        %v553 = vld [vmem:[#allocation5 + $0x2c] sm:$0xf]
        %v554 = vld [vmem:[#allocation5 + $0x30] sm:$0xff]
        %v555 = vld [vmem:[#allocation5 + $0x38] sm:$0xf]
        %v556 = vld [vmem:[#allocation5 + $0x3c] sm:$0xff]
        %v557 = vld [vmem:[#allocation5 + $0x44] sm:$0xf]
        %v558 = vld [vmem:[#allocation5 + $0x48] sm:$0xff]
        %v559 = vld [vmem:[#allocation5 + $0x50] sm:$0xf]
        %v560 = vld [vmem:[#allocation5 + $0x54] sm:$0xff]
        %v561 = vld [vmem:[#allocation5 + $0x5c] sm:$0xf]
        %v562 = vld [vmem:[#allocation5 + $0x60] sm:$0xff]
        %v563 = vld [vmem:[#allocation5 + $0x68] sm:$0xf]
        %v564 = vld [vmem:[#allocation5 + $0x6c] sm:$0xff]
        %v565 = vld [vmem:[#allocation5 + $0x74] sm:$0xf]
        %v566 = vld [vmem:[#allocation5 + $0x78] sm:$0xff]
        %v567 = vld [vmem:[#allocation5 + $0x80] sm:$0xf]
        %v568 = vld [vmem:[#allocation5 + $0x84] sm:$0xff]
        %v569 = vld [vmem:[#allocation5 + $0x8c] sm:$0xf]
        %v570 = vld [vmem:[#allocation5 + $0x90] sm:$0xff]
        %v571 = vld [vmem:[#allocation5 + $0x98] sm:$0xf]
        %v572 = vld [vmem:[#allocation5 + $0x9c] sm:$0xff]
        %v573 = vld [vmem:[#allocation5 + $0xa4] sm:$0xf]
        %v574 = vld [vmem:[#allocation5 + $0xa8] sm:$0xff]
        %v575 = vld [vmem:[#allocation5 + $0xb0] sm:$0xf]
        %v576 = vld [vmem:[#allocation5 + $0xb4] sm:$0xff]
        %v577 = vld [vmem:[#allocation5 + $0xbc] sm:$0xf]
        %v610 = vunpack.c.l.b16 %v546
        %v611 = vunpack.c.h.b16 %v546
        %v612 = vunpack.c.l.b16 %v547
        %v613 = vunpack.c.l.b16 %v548
        %v614 = vunpack.c.h.b16 %v548
        %v615 = vunpack.c.l.b16 %v549
        %v616 = vunpack.c.l.b16 %v550
        %v617 = vunpack.c.h.b16 %v550
        %v618 = vunpack.c.l.b16 %v551
        %v619 = vunpack.c.l.b16 %v552
        %v620 = vunpack.c.h.b16 %v552
        %v621 = vunpack.c.l.b16 %v553
        %v622 = vunpack.c.l.b16 %v554
        %v623 = vunpack.c.h.b16 %v554
        %v624 = vunpack.c.l.b16 %v555
        %v625 = vunpack.c.l.b16 %v556
        %v626 = vunpack.c.h.b16 %v556
        %v627 = vunpack.c.l.b16 %v557
        %v628 = vunpack.c.l.b16 %v558
        %v629 = vunpack.c.h.b16 %v558
        %v630 = vunpack.c.l.b16 %v559
        %v631 = vunpack.c.l.b16 %v560
        %v632 = vunpack.c.h.b16 %v560
        %v633 = vunpack.c.l.b16 %v561
        %v634 = vunpack.c.l.b16 %v562
        %v635 = vunpack.c.h.b16 %v562
        %v636 = vunpack.c.l.b16 %v563
        %v637 = vunpack.c.l.b16 %v564
        %v638 = vunpack.c.h.b16 %v564
        %v639 = vunpack.c.l.b16 %v565
        %v640 = vunpack.c.l.b16 %v566
        %v641 = vunpack.c.h.b16 %v566
        %v642 = vunpack.c.l.b16 %v567
        %v643 = vunpack.c.l.b16 %v568
        %v644 = vunpack.c.h.b16 %v568
        %v645 = vunpack.c.l.b16 %v569
        %v646 = vunpack.c.l.b16 %v570
        %v647 = vunpack.c.h.b16 %v570
        %v648 = vunpack.c.l.b16 %v571
        %v649 = vunpack.c.l.b16 %v572
        %v650 = vunpack.c.h.b16 %v572
        %v651 = vunpack.c.l.b16 %v573
        %v652 = vunpack.c.l.b16 %v574
        %v653 = vunpack.c.h.b16 %v574
        %v654 = vunpack.c.l.b16 %v575
        %v655 = vunpack.c.l.b16 %v576
        %v656 = vunpack.c.h.b16 %v576
        %v657 = vunpack.c.l.b16 %v577
        %v658 = vpack.c.b16 %v613, %v610
        %v659 = vpack.c.b16 %v614, %v611
        %v660 = vpack.c.b16 %v615, %v612
        %v661 = vpack.c.b16 %v619, %v616
        %v662 = vpack.c.b16 %v620, %v617
        %v663 = vpack.c.b16 %v621, %v618
        %v664 = vpack.c.b16 %v625, %v622
        %v665 = vpack.c.b16 %v626, %v623
        %v666 = vpack.c.b16 %v627, %v624
        %v667 = vpack.c.b16 %v631, %v628
        %v668 = vpack.c.b16 %v632, %v629
        %v669 = vpack.c.b16 %v633, %v630
        %v670 = vpack.c.b16 %v637, %v634
        %v671 = vpack.c.b16 %v638, %v635
        %v672 = vpack.c.b16 %v639, %v636
        %v673 = vpack.c.b16 %v643, %v640
        %v674 = vpack.c.b16 %v644, %v641
        %v675 = vpack.c.b16 %v645, %v642
        %v676 = vpack.c.b16 %v649, %v646
        %v677 = vpack.c.b16 %v650, %v647
        %v678 = vpack.c.b16 %v651, %v648
        %v679 = vpack.c.b16 %v655, %v652
        %v680 = vpack.c.b16 %v656, %v653
        %v681 = vpack.c.b16 %v657, %v654
        %706 = vmatpush.bf16.msra.mxu0 %v679
        %707 = vmatpush.bf16.msra.mxu0 %v676
        %708 = vmatpush.bf16.msra.mxu0 %v673
        %709 = vmatpush.bf16.msra.mxu0 %v670
        %710 = vmatpush.bf16.msra.mxu0 %v667
        %711 = vmatpush.bf16.msra.mxu0 %v664
        %712 = vmatpush.bf16.msra.mxu0 %v661
        %713 = vmatpush.bf16.msra.mxu0 %v658
        %714 = vmatmul.bf16.gmra.mxu0 %v545
        %v715 = vpop.f32.mrf.mxu0
        %v716 = vadd.f32 0.0, %v715
        %v717 = vpop.f32.mrf.mxu0
        %718 = vdwg.mxu0
        %719 = vmatpush.bf16.msra.mxu0 %v680
        %720 = vmatpush.bf16.msra.mxu0 %v677
        %721 = vmatpush.bf16.msra.mxu0 %v674
        %722 = vmatpush.bf16.msra.mxu0 %v671
        %723 = vmatpush.bf16.msra.mxu0 %v668
        %724 = vmatpush.bf16.msra.mxu0 %v665
        %725 = vmatpush.bf16.msra.mxu0 %v662
        %726 = vmatpush.bf16.msra.mxu0 %v659
        %727 = vmatmul.bf16.gmra.mxu0 %v545
        %v728 = vpop.f32.mrf.mxu0
        %v729 = vadd.f32 0.0, %v728
        %v730 = vpop.f32.mrf.mxu0
        %731 = vdwg.mxu0
        %732 = vmatpush.bf16.msra.mxu0 %v681
        %733 = vmatpush.bf16.msra.mxu0 %v678
        %734 = vmatpush.bf16.msra.mxu0 %v675
        %735 = vmatpush.bf16.msra.mxu0 %v672
        %736 = vmatpush.bf16.msra.mxu0 %v669
        %737 = vmatpush.bf16.msra.mxu0 %v666
        %738 = vmatpush.bf16.msra.mxu0 %v663
        %739 = vmatpush.bf16.msra.mxu0 %v660
        %740 = vmatmul.bf16.gmra.mxu0 %v545
        %v741 = vpop.f32.mrf.mxu0
        %v742 = vadd.f32 0.0, %v741
        %v743 = vpop.f32.mrf.mxu0
        %744 = vdwg.mxu0
        %v745 = vtanh.pop %v716
        %v746 = vtanh.pop %v729
        %v747 = vtanh.pop %v742
        %v749 = vrot.slane %v746, 5
        %v752 = vrot.slane %v747, 2
        %vm754 = vcmask 1042432
        %v755 = vsel %vm754, %v745, %v749
        %vm756 = vcmask 1045504
        %v757 = vsel %vm756, %v755, %v752
        %v758 = vsel %vm541, %v752, 0.0
        %v759 = vadd.f32 %v757, %v758
        %v760 = vrot.slane %v759, 4
        %v761 = vadd.f32 %v759, %v760
        %v762 = vrot.slane %v761, 2
        %v763 = vadd.f32 %v761, %v762
        %v764 = vrot.slane %v763, 1
        %v765 = vadd.f32 %v763, %v764
        %v766 = vmul.f32 %v765, 0.11111111
        %v767 = vpack.c.bf16 %v766, %v766
        %v768 = vld [vmem:[%s3] sm:$0xf]
        %v769 = vld [vmem:[%s3 + $0x4] sm:$0xf]
        %v770 = vld [vmem:[%s3 + $0x8] sm:$0xf]
        %v771 = vld [vmem:[%s3 + $0xc] sm:$0xf]
        %v772 = vld [vmem:[%s3 + $0x10] sm:$0xf]
        %v773 = vld [vmem:[%s3 + $0x14] sm:$0xf]
        %v774 = vld [vmem:[%s3 + $0x18] sm:$0xf]
        %v775 = vld [vmem:[%s3 + $0x1c] sm:$0xf]
        %v776 = vld [vmem:[%s3 + $0x20] sm:$0xf]
        %v777 = vld [vmem:[%s3 + $0x24] sm:$0xf]
        %v778 = vld [vmem:[%s3 + $0x28] sm:$0xf]
        %v779 = vld [vmem:[%s3 + $0x2c] sm:$0xf]
        %v780 = vld [vmem:[%s3 + $0x30] sm:$0xf]
        %v781 = vld [vmem:[%s3 + $0x34] sm:$0xf]
        %v782 = vld [vmem:[%s3 + $0x38] sm:$0xf]
        %v783 = vld [vmem:[%s3 + $0x3c] sm:$0xf]
        %v800 = vunpack.c.l.b16 %v768
        %v801 = vunpack.c.l.b16 %v769
        %v802 = vunpack.c.l.b16 %v770
        %v803 = vunpack.c.l.b16 %v771
        %v804 = vunpack.c.l.b16 %v772
        %v805 = vunpack.c.l.b16 %v773
        %v806 = vunpack.c.l.b16 %v774
        %v807 = vunpack.c.l.b16 %v775
        %v808 = vunpack.c.l.b16 %v776
        %v809 = vunpack.c.l.b16 %v777
        %v810 = vunpack.c.l.b16 %v778
        %v811 = vunpack.c.l.b16 %v779
        %v812 = vunpack.c.l.b16 %v780
        %v813 = vunpack.c.l.b16 %v781
        %v814 = vunpack.c.l.b16 %v782
        %v815 = vunpack.c.l.b16 %v783
        %v816 = vpack.c.b16 %v801, %v800
        %v817 = vpack.c.b16 %v803, %v802
        %v818 = vpack.c.b16 %v805, %v804
        %v819 = vpack.c.b16 %v807, %v806
        %v820 = vpack.c.b16 %v809, %v808
        %v821 = vpack.c.b16 %v811, %v810
        %v822 = vpack.c.b16 %v813, %v812
        %v823 = vpack.c.b16 %v815, %v814
        %832 = vmatpush.bf16.msra.mxu0 %v823
        %833 = vmatpush.bf16.msra.mxu0 %v822
        %834 = vmatpush.bf16.msra.mxu0 %v821
        %835 = vmatpush.bf16.msra.mxu0 %v820
        %836 = vmatpush.bf16.msra.mxu0 %v819
        %837 = vmatpush.bf16.msra.mxu0 %v818
        %838 = vmatpush.bf16.msra.mxu0 %v817
        %839 = vmatpush.bf16.msra.mxu0 %v816
        %840 = vmatmul.bf16.gmra.mxu0 %v767
        %v841 = vpop.f32.mrf.mxu0
        %v842 = vadd.f32 0.0, %v841
        %v843 = vpop.f32.mrf.mxu0
        %844 = vdwg.mxu0
        %v845 = vmax.f32 %v842, 0.0
        %v846 = vpack.c.bf16 %v845, %v845
        %v847 = vld [vmem:[%s4] sm:$0xf]
        %v848 = vld [vmem:[%s4 + $0x4] sm:$0xf]
        %v849 = vld [vmem:[%s4 + $0x8] sm:$0xf]
        %v850 = vld [vmem:[%s4 + $0xc] sm:$0xf]
        %v851 = vld [vmem:[%s4 + $0x10] sm:$0xf]
        %v852 = vld [vmem:[%s4 + $0x14] sm:$0xf]
        %v853 = vld [vmem:[%s4 + $0x18] sm:$0xf]
        %v854 = vld [vmem:[%s4 + $0x1c] sm:$0xf]
        %v855 = vld [vmem:[%s4 + $0x20] sm:$0xf]
        %v856 = vld [vmem:[%s4 + $0x24] sm:$0xf]
        %v857 = vld [vmem:[%s4 + $0x28] sm:$0xf]
        %v858 = vld [vmem:[%s4 + $0x2c] sm:$0xf]
        %v859 = vld [vmem:[%s4 + $0x30] sm:$0xf]
        %v860 = vld [vmem:[%s4 + $0x34] sm:$0xf]
        %v861 = vld [vmem:[%s4 + $0x38] sm:$0xf]
        %v862 = vld [vmem:[%s4 + $0x3c] sm:$0xf]
        %v879 = vunpack.c.l.b16 %v847
        %v880 = vunpack.c.l.b16 %v848
        %v881 = vunpack.c.l.b16 %v849
        %v882 = vunpack.c.l.b16 %v850
        %v883 = vunpack.c.l.b16 %v851
        %v884 = vunpack.c.l.b16 %v852
        %v885 = vunpack.c.l.b16 %v853
        %v886 = vunpack.c.l.b16 %v854
        %v887 = vunpack.c.l.b16 %v855
        %v888 = vunpack.c.l.b16 %v856
        %v889 = vunpack.c.l.b16 %v857
        %v890 = vunpack.c.l.b16 %v858
        %v891 = vunpack.c.l.b16 %v859
        %v892 = vunpack.c.l.b16 %v860
        %v893 = vunpack.c.l.b16 %v861
        %v894 = vunpack.c.l.b16 %v862
        %v895 = vpack.c.b16 %v880, %v879
        %v896 = vpack.c.b16 %v882, %v881
        %v897 = vpack.c.b16 %v884, %v883
        %v898 = vpack.c.b16 %v886, %v885
        %v899 = vpack.c.b16 %v888, %v887
        %v900 = vpack.c.b16 %v890, %v889
        %v901 = vpack.c.b16 %v892, %v891
        %v902 = vpack.c.b16 %v894, %v893
        %911 = vmatpush.bf16.msra.mxu0 %v902
        %912 = vmatpush.bf16.msra.mxu0 %v901
        %913 = vmatpush.bf16.msra.mxu0 %v900
        %914 = vmatpush.bf16.msra.mxu0 %v899
        %915 = vmatpush.bf16.msra.mxu0 %v898
        %916 = vmatpush.bf16.msra.mxu0 %v897
        %917 = vmatpush.bf16.msra.mxu0 %v896
        %918 = vmatpush.bf16.msra.mxu0 %v895
        %919 = vmatmul.bf16.gmra.mxu0 %v846
        %v920 = vpop.f32.mrf.mxu0
        %v921 = vadd.f32 0.0, %v920
        %v922 = vpop.f32.mrf.mxu0
        %923 = vdwg.mxu0
        %v924 = vpack.c.bf16 %v752, %v757
        %v925 = vld [vmem:[%s5] sm:$0xf]
        %v926 = vld [vmem:[%s5 + $0x4] sm:$0xf]
        %v927 = vld [vmem:[%s5 + $0x8] sm:$0xf]
        %v928 = vld [vmem:[%s5 + $0xc] sm:$0xf]
        %v929 = vld [vmem:[%s5 + $0x10] sm:$0xf]
        %v930 = vld [vmem:[%s5 + $0x14] sm:$0xf]
        %v931 = vld [vmem:[%s5 + $0x18] sm:$0xf]
        %v932 = vld [vmem:[%s5 + $0x1c] sm:$0xf]
        %v933 = vld [vmem:[%s5 + $0x20] sm:$0xf]
        %v934 = vld [vmem:[%s5 + $0x24] sm:$0xf]
        %v935 = vld [vmem:[%s5 + $0x28] sm:$0xf]
        %v936 = vld [vmem:[%s5 + $0x2c] sm:$0xf]
        %v937 = vld [vmem:[%s5 + $0x30] sm:$0xf]
        %v938 = vld [vmem:[%s5 + $0x34] sm:$0xf]
        %v939 = vld [vmem:[%s5 + $0x38] sm:$0xf]
        %v940 = vld [vmem:[%s5 + $0x3c] sm:$0xf]
        %v941 = vperm.slane %v921, 0
        %v958 = vunpack.c.l.b16 %v925
        %v959 = vunpack.c.l.b16 %v926
        %v960 = vunpack.c.l.b16 %v927
        %v961 = vunpack.c.l.b16 %v928
        %v962 = vunpack.c.l.b16 %v929
        %v963 = vunpack.c.l.b16 %v930
        %v964 = vunpack.c.l.b16 %v931
        %v965 = vunpack.c.l.b16 %v932
        %v966 = vunpack.c.l.b16 %v933
        %v967 = vunpack.c.l.b16 %v934
        %v968 = vunpack.c.l.b16 %v935
        %v969 = vunpack.c.l.b16 %v936
        %v970 = vunpack.c.l.b16 %v937
        %v971 = vunpack.c.l.b16 %v938
        %v972 = vunpack.c.l.b16 %v939
        %v973 = vunpack.c.l.b16 %v940
        %v974 = vpack.c.b16 %v959, %v958
        %v975 = vpack.c.b16 %v961, %v960
        %v976 = vpack.c.b16 %v963, %v962
        %v977 = vpack.c.b16 %v965, %v964
        %v978 = vpack.c.b16 %v967, %v966
        %v979 = vpack.c.b16 %v969, %v968
        %v980 = vpack.c.b16 %v971, %v970
        %v981 = vpack.c.b16 %v973, %v972
        %990 = vmatpush.bf16.msra.mxu0 %v981
        %991 = vmatpush.bf16.msra.mxu0 %v980
        %992 = vmatpush.bf16.msra.mxu0 %v979
        %993 = vmatpush.bf16.msra.mxu0 %v978
        %994 = vmatpush.bf16.msra.mxu0 %v977
        %995 = vmatpush.bf16.msra.mxu0 %v976
        %996 = vmatpush.bf16.msra.mxu0 %v975
        %997 = vmatpush.bf16.msra.mxu0 %v974
        %998 = vmatmul.bf16.gmra.mxu0 %v924
        %v999 = vpop.f32.mrf.mxu0
        %v1000 = vadd.f32 %v941, %v999
        %v1001 = vpop.f32.mrf.mxu0
        %v1002 = vadd.f32 %v941, %v1001
        %1003 = vdwg.mxu0
        %v1004 = vld [vmem:[%s6] sm:$0x1]
        %v1006 = vperm.slane %v1004, 0
        %v1008 = vadd.f32 %v1000, %v1006
        %v1009 = vadd.f32 %v1002, %v1006
        %v1010 = vtanh.pop %v1008
        %v1011 = vtanh.pop %v1009
        %v1012 = vld [vmem:[%s7] sm:$0x1]
        %v1014 = vperm.slane %v1012, 0
        %v1016 = vmul.f32 %v1010, %v1014
        %v1017 = vmul.f32 %v1011, %v1014
        %vm1018 = vcmask 64512
        %v1019 = vsel %vm1018, %v1016, 0.0
        %1020 = vadd.xlane.f32.xlu0 %v1019
        %v1021 = vpop.xlane.xlu0 %1020
        %vm1022 = vcmask 57344
        %v1023 = vsel %vm1022, %v1017, 0.0
        %1024 = vadd.xlane.f32.xlu0 %v1023
        %v1025 = vpop.xlane.xlu0 %1024
        %v1026 = vsel %vm541, %v1025, -inf
        %v1027 = vmax.f32 %v1021, %v1026
        %v1028 = vrot.slane %v1027, 4
        %v1029 = vmax.f32 %v1027, %v1028
        %v1030 = vrot.slane %v1029, 2
        %v1031 = vmax.f32 %v1029, %v1030
        %v1032 = vrot.slane %v1031, 1
        %v1033 = vmax.f32 %v1031, %v1032
        %v1034 = vsub.f32 %v1021, %v1033
        %v1035 = vsub.f32 %v1025, %v1033
        %v1036 = vmul.f32 %v1034, 1.442695
        %v1037 = vpow.pop %v1036
        %v1038 = vmul.f32 %v1035, 1.442695
        %v1039 = vpow.pop %v1038
        %v1040 = vsel %vm541, %v1039, 0.0
        %v1041 = vadd.f32 %v1037, %v1040
        %v1042 = vrot.slane %v1041, 4
        %v1043 = vadd.f32 %v1041, %v1042
        %v1044 = vrot.slane %v1043, 2
        %v1045 = vadd.f32 %v1043, %v1044
        %v1046 = vrot.slane %v1045, 1
        %v1047 = vadd.f32 %v1045, %v1046
        %v1048 = vrcp.pop %v1047
        %v1049 = vmul.f32 %v1037, %v1048
        %v1050 = vmul.f32 %v1039, %v1048
        %v1051 = vmul.f32 %v1049, %v757
        %v1052 = vmul.f32 %v1050, %v752
        %v1053 = vsel %vm541, %v1052, 0.0
        %v1054 = vadd.f32 %v1051, %v1053
        %v1055 = vrot.slane %v1054, 4
        %v1056 = vadd.f32 %v1054, %v1055
        %v1057 = vrot.slane %v1056, 2
        %v1058 = vadd.f32 %v1056, %v1057
        %v1059 = vrot.slane %v1058, 1
        %v1060 = vadd.f32 %v1058, %v1059
        %v1061 = vadd.f32 %v331, %v1060
        %1062 = vst [vmem:[%s327] sm:$0x1] %v1061
        %s1063 = sand.u32 %s205, 1
        %s1064 = scalar_lea.sflag [#allocation4], %s1063
        %s1065 = sand.u32 %s205, 1
        %s1066 = scalar_lea.vmem [#allocation7], %s1065
        // Predicated region
        $region61: #{tpu_custom_call.1} parent=51 // pred_check
          %p1067 = pneg %p215
        $region62: #{tpu_custom_call.1} parent=51 // pred_check_branch
          %1069 = sbr.rel (%p1067) target = $region64
        $region63: #{tpu_custom_call.1} parent=51 // pred_region
          %1071 = vsyncadd %s1064, 0
          %s1072 = scalar_lea.hbm %s8, %s24
          %s1074 = sshll.u32 %s1066, 4
          %s1075 = int_to_ptr.vmem [resolvable:$true] %s1074
          %s1076 = sshll.u32 %s1072, 4
          %s1077 = int_to_ptr.hbm [resolvable:$true] %s1076
          %1079 = dma.vmem_to_hbm [thread:$0]  %s1075, 16, %s1077, %s1064
        $region64: #{tpu_custom_call.1} parent=51 // pred_fallthru
          _
      $region52: #{tpu_custom_call.1} parent=5 // pred_fallthru
        _
      %p1080 = scmp.le.s32.totalorder 2, %s19
      // Predicated region
      $region65: #{tpu_custom_call.1} parent=5 // pred_check
        %p1081 = pneg %p1080
      $region66: #{tpu_custom_call.1} parent=5 // pred_check_branch
        %1083 = sbr.rel (%p1081) target = $region68
      $region67: #{tpu_custom_call.1} parent=5 // pred_region
        %s1084 = ssub.s32 %s19, 2
        // Predicated region
        $region69: #{tpu_custom_call.1} parent=67 // pred_check
          %p1085 = pneg %p221
        $region70: #{tpu_custom_call.1} parent=67 // pred_check_branch
          %1087 = sbr.rel (%p1085) target = $region72
        $region71: #{tpu_custom_call.1} parent=67 // pred_region
          %s1088 = sand.u32 %s206, 1
          %s1089 = scalar_lea.sflag [#allocation4], %s1088
          %s1090 = sand.u32 %s206, 1
          %s1091 = scalar_lea.vmem [#allocation7], %s1090
          %1093 = dma.done %s1089, 16
        $region72: #{tpu_custom_call.1} parent=67 // pred_fallthru
          _
      $region68: #{tpu_custom_call.1} parent=5 // pred_fallthru
        _
    $region6: #{tpu_custom_call.1} parent=1 // loop_footer
      %s23 = sadd.s32 1, %s19
    $region7: #{tpu_custom_call.1} parent=1 // loop_footer_branch
      %18 = sbr.rel target = $region3
    $region8: #{tpu_custom_call.1} parent=1 // loop_exit
      _
    %1094 = vsyncpa [#allocation3], 1
    %s1095 = scalar_lea.sflag [#allocation3], 1
    %1096 = vsyncpa %s1095, 1
    %1097 = vsyncpa [#allocation6], 1
    %1098 = vsyncpa [#allocation4], 1
    %s1099 = scalar_lea.sflag [#allocation4], 1
    %1100 = vsyncpa %s1099, 1

</llo_original>
